<compile_context>
chip_gen: v6e
topology: v6e:2x2x1
jax: 0.10.0
libtpu: 0.0.40
codegen_flags: <defaults>
</compile_context>

<pallas_src>
import functools

import jax
import jax.numpy as jnp
from jax.experimental import pallas as pl
from jax.experimental.pallas import tpu as pltpu


_SUBLANE = 8
_LANES = 128


def _round_up(x, m):
    return (x + m - 1) // m * m


# Packed-parameter row layout (Hp = H rounded up to a multiple of 128):
#   rows 0..1 : w1            (2, H)
#   row  2    : b1            (H,)
#   row  3    : b2            (H,)
#   row  4    : w3^T          (H,)
#   row  5    : b3 broadcast  (H,)
#   rows 6..7 : zero padding
#   rows 8..  : w2            (H, H)
def pack_params(params):
    """Pack (w1, b1, w2, b2, w3, b3) into one (8+Hp, Hp) f32 buffer.

    Call this ONCE per weight update (outside the per-step forward path) and
    reuse the result; it is a handful of dynamic-update-slices plus an HBM
    round trip that would otherwise dominate small-batch inference latency.
    """
    w1, b1, w2, b2, w3, b3 = [jnp.asarray(p, jnp.float32) for p in params]
    H = w1.shape[1]
    assert w1.shape == (2, H), w1.shape
    assert b1.shape == (H,), b1.shape
    assert w2.shape == (H, H), w2.shape
    assert b2.shape == (H,), b2.shape
    assert w3.shape == (H, 1), w3.shape
    assert b3.shape == (1,), b3.shape

    Hp = _round_up(H, _LANES)
    P = jnp.zeros((8 + Hp, Hp), jnp.float32)
    P = P.at[0:2, :H].set(w1)
    P = P.at[2, :H].set(b1)
    P = P.at[3, :H].set(b2)
    P = P.at[4, :H].set(w3[:, 0])
    P = P.at[5, :H].set(jnp.broadcast_to(b3, (H,)))
    P = P.at[8:8 + H, :H].set(w2)
    return P


def actor_kernel(x_ref, p_ref, o_ref, *, mm_dtype):
    """One batch tile of policy = L3(tanh(L2(tanh(L1(state))))).

    x_ref : (TB, 2)        state tile (f32)
    p_ref : (8+Hp, Hp)     packed parameters, VMEM-resident across the grid
    o_ref : (TB, 1)        policy output tile (f32)
    """
    Hp = p_ref.shape[1]
    x = x_ref[...]                                            # (TB, 2)

    # ---- layer 1: Linear(2, H) + tanh.  K=2 -> VPU broadcast-mul-add,
    # avoids an MXU fill/drain round-trip on the serial critical path.
    h1 = jnp.tanh(x[:, 0:1] * p_ref[0:1, :]
                  + x[:, 1:2] * p_ref[1:2, :]
                  + p_ref[2:3, :])                            # (TB, Hp) f32

    # ---- layer 2: Linear(H, H) + tanh.  Only matmul worth the MXU.
    # bf16 operands on v6e/v7x, f32 accumulate; f32 operands on v5e.
    w2 = p_ref[8:8 + Hp, :]                                   # (Hp, Hp)
    h2 = jnp.tanh(
        jnp.dot(h1.astype(mm_dtype), w2.astype(mm_dtype),
                preferred_element_type=jnp.float32)
        + p_ref[3:4, :])                                      # (TB, Hp) f32

    # ---- layer 3: Linear(H, 1).  N=1 -> VPU mul + cross-lane (XLU) reduce.
    policy = (jnp.sum(h2 * p_ref[4:5, :], axis=-1, keepdims=True)
              + p_ref[5:6, 0:1])                              # (TB, 1)

    o_ref[...] = policy.astype(o_ref.dtype)


def _default_matmul_dtype():
    """bf16 MXU operands on v6e/v7x; f32 on v5e and anything unrecognized."""
    try:
        kind = jax.devices()[0].device_kind.lower()
    except Exception:
        return jnp.float32
    if "v6" in kind or "v7" in kind or "7x" in kind:
        return jnp.bfloat16
    return jnp.float32


def actor_forward(state, packed_params, *, block_b=2048, matmul_dtype=None):
    """Returns policy(state): (B, 1) f32.  `packed_params` = pack_params(...)."""
    if matmul_dtype is None:
        matmul_dtype = _default_matmul_dtype()

    state = jnp.asarray(state, jnp.float32)
    B = state.shape[0]

    # Batch tile: up to block_b rows, always a multiple of 8 sublanes.
    TB = min(block_b, _round_up(B, _SUBLANE))
    # v7x has 2 TensorCores; for large batches keep >= 2 grid steps so the
    # "parallel" axis shards across both cores (harmless on v5e/v6e; only
    # split when each half-tile still amortizes the per-step overhead).
    if B >= 1024 and _round_up(B, _SUBLANE) <= TB:
        TB = _round_up((B + 1) // 2, _SUBLANE)
    n_tiles = (B + TB - 1) // TB
    B_pad = n_tiles * TB
    if B_pad != B:
        state = jnp.pad(state, ((0, B_pad - B), (0, 0)))

    kernel = functools.partial(actor_kernel, mm_dtype=matmul_dtype)
    out = pl.pallas_call(
        kernel,
        out_shape=jax.ShapeDtypeStruct((B_pad, 1), jnp.float32),
        grid=(n_tiles,),
        in_specs=[
            pl.BlockSpec((TB, 2), lambda i: (i, 0)),          # state tile
            # Constant index_map -> packed params DMA'd once, VMEM-resident.
            # TODO(synk): at large hidden_size on v7x (64 MiB VMEM) single-
            # buffer this block (pipeline_mode=pl.Buffered(1)) or raise
            # vmem_limit_bytes; unnecessary at toy sizes.
            pl.BlockSpec(packed_params.shape, lambda i: (0, 0)),
        ],
        # Narrow (TB, 1) output: same TB/8 vreg stores as a wide slab, but
        # 128x less HBM writeback, and the wrapper slice below is cheap.
        out_specs=pl.BlockSpec((TB, 1), lambda i: (i, 0)),
        compiler_params=pltpu.CompilerParams(
            dimension_semantics=("parallel",)),
    )(state, packed_params)

    return out[:B]


def init_params(key, hidden_size):
    """Deterministic synthetic params (PyTorch-Linear-like uniform init)."""
    ks = jax.random.split(key, 6)

    def linear(kw, kb, fan_in, fan_out):
        bound = 1.0 / jnp.sqrt(fan_in)
        w = jax.random.uniform(kw, (fan_in, fan_out), jnp.float32, -bound, bound)
        b = jax.random.uniform(kb, (fan_out,), jnp.float32, -bound, bound)
        return w, b

    w1, b1 = linear(ks[0], ks[1], 2, hidden_size)
    w2, b2 = linear(ks[2], ks[3], hidden_size, hidden_size)
    w3, b3 = linear(ks[4], ks[5], hidden_size, 1)
    return (w1, b1, w2, b2, w3, b3)


def reference_forward(state, params):
    w1, b1, w2, b2, w3, b3 = params
    h1 = jnp.tanh(state @ w1 + b1)
    h2 = jnp.tanh(h1 @ w2 + b2)
    return h2 @ w3 + b3


if __name__ == "__main__":
    key = jax.random.PRNGKey(0)
    k_params, k_state, k_state2, k_state3 = jax.random.split(key, 4)

    hidden_size = 32
    batch = 8

    params = init_params(k_params, hidden_size)
    # Pack once (hoisted out of the per-call forward path) and reuse.
    P = pack_params(params)

    state = jax.random.normal(k_state, (batch, 2), jnp.float32)
    ref = reference_forward(state, params)

    # Exact path (f32 MXU operands) -> tight tolerance.
    policy_f32 = actor_forward(state, P, matmul_dtype=jnp.float32)
    jax.block_until_ready(policy_f32)
    assert policy_f32.shape == (batch, 1)
    assert jnp.allclose(policy_f32, ref, atol=1e-5, rtol=1e-5)

    # Device-tuned default (bf16 MXU operands on v6e/v7x, f32 on v5e).
    default_dt = _default_matmul_dtype()
    tol = 3e-2 if default_dt == jnp.bfloat16 else 1e-5
    policy = actor_forward(state, P)
    jax.block_until_ready(policy)
    assert policy.shape == (batch, 1)
    assert jnp.allclose(policy, ref, atol=tol, rtol=tol)

    # Non-multiple-of-8 batch (pad + slice in the wrapper).
    state2 = jax.random.normal(k_state2, (5, 2), jnp.float32)
    policy2 = actor_forward(state2, P, matmul_dtype=jnp.float32)
    jax.block_until_ready(policy2)
    assert jnp.allclose(policy2, reference_forward(state2, params),
                        atol=1e-5, rtol=1e-5)

    # Multi-tile grid path (force a small block so the grid has > 1 step).
    state3 = jax.random.normal(k_state3, (20, 2), jnp.float32)
    policy3 = actor_forward(state3, P, block_b=8, matmul_dtype=jnp.float32)
    jax.block_until_ready(policy3)
    assert jnp.allclose(policy3, reference_forward(state3, params),
                        atol=1e-5, rtol=1e-5)

    print("KERNEL_OK")
</pallas_src>

<mosaic_0001>
module attributes {stable_mosaic.version = 11 : i64} {
  func.func @actor_kernel(%arg0: i32, %arg1: memref<8x2xf32, #tpu.memory_space<vmem>>, %arg2: memref<136x128xf32, #tpu.memory_space<vmem>>, %arg3: memref<8x1xf32, #tpu.memory_space<vmem>>) attributes {dimension_semantics = [#tpu.dimension_semantics<parallel>], iteration_bounds = array<i64: 1>, scalar_prefetch = 0 : i64, scratch_operands = 0 : i64, tpu.core_type = #tpu.core_type<tc>, window_params = [{transform_indices = @transform_0, window_bounds = array<i64: 8, 2>}, {pipeline_mode = #tpu.pipeline_mode<synchronous>, transform_indices = @transform_1, window_bounds = array<i64: 136, 128>}, {transform_indices = @transform_2, window_bounds = array<i64: 8, 1>}]} {
    %c0 = arith.constant 0 : index
    %c0_0 = arith.constant 0 : index
    %0 = vector.load %arg1[%c0, %c0_0] : memref<8x2xf32, #tpu.memory_space<vmem>>, vector<8x2xf32>
    %1 = vector.extract_strided_slice %0 {offsets = [0, 0], sizes = [8, 1], strides = [1, 1]} : vector<8x2xf32> to vector<8x1xf32>
    %c0_1 = arith.constant 0 : index
    %c0_2 = arith.constant 0 : index
    %2 = vector.load %arg2[%c0_1, %c0_2] : memref<136x128xf32, #tpu.memory_space<vmem>>, vector<1x128xf32>
    %3 = vector.broadcast %1 : vector<8x1xf32> to vector<8x128xf32>
    %4 = vector.broadcast %2 : vector<1x128xf32> to vector<8x128xf32>
    %5 = arith.mulf %3, %4 : vector<8x128xf32>
    %6 = vector.extract_strided_slice %0 {offsets = [0, 1], sizes = [8, 1], strides = [1, 1]} : vector<8x2xf32> to vector<8x1xf32>
    %c1 = arith.constant 1 : index
    %c0_3 = arith.constant 0 : index
    %7 = vector.load %arg2[%c1, %c0_3] : memref<136x128xf32, #tpu.memory_space<vmem>>, vector<1x128xf32>
    %8 = vector.broadcast %6 : vector<8x1xf32> to vector<8x128xf32>
    %9 = vector.broadcast %7 : vector<1x128xf32> to vector<8x128xf32>
    %10 = arith.mulf %8, %9 : vector<8x128xf32>
    %11 = arith.addf %5, %10 : vector<8x128xf32>
    %c2 = arith.constant 2 : index
    %c0_4 = arith.constant 0 : index
    %12 = vector.load %arg2[%c2, %c0_4] : memref<136x128xf32, #tpu.memory_space<vmem>>, vector<1x128xf32>
    %13 = vector.broadcast %12 : vector<1x128xf32> to vector<8x128xf32>
    %14 = arith.addf %11, %13 : vector<8x128xf32>
    %15 = math.tanh %14 : vector<8x128xf32>
    %c8 = arith.constant 8 : index
    %c0_5 = arith.constant 0 : index
    %16 = vector.load %arg2[%c8, %c0_5] : memref<136x128xf32, #tpu.memory_space<vmem>>, vector<128x128xf32>
    %cst = arith.constant dense<0.000000e+00> : vector<8x128xf32>
    %17 = tpu.matmul %15, %16, %cst {dimension_numbers = #tpu.dot_dimension_numbers<[1], [0], [0], [1], [0, 0, 1, 1], [], []>} : vector<8x128xf32>, vector<128x128xf32>, vector<8x128xf32> -> vector<8x128xf32>
    %c3 = arith.constant 3 : index
    %c0_6 = arith.constant 0 : index
    %18 = vector.load %arg2[%c3, %c0_6] : memref<136x128xf32, #tpu.memory_space<vmem>>, vector<1x128xf32>
    %19 = vector.broadcast %18 : vector<1x128xf32> to vector<8x128xf32>
    %20 = arith.addf %17, %19 : vector<8x128xf32>
    %21 = math.tanh %20 : vector<8x128xf32>
    %c4 = arith.constant 4 : index
    %c0_7 = arith.constant 0 : index
    %22 = vector.load %arg2[%c4, %c0_7] : memref<136x128xf32, #tpu.memory_space<vmem>>, vector<1x128xf32>
    %23 = vector.broadcast %22 : vector<1x128xf32> to vector<8x128xf32>
    %24 = arith.mulf %21, %23 : vector<8x128xf32>
    %cst_8 = arith.constant dense<0.000000e+00> : vector<8xf32>
    %25 = vector.multi_reduction <add>, %24, %cst_8 [1] : vector<8x128xf32> to vector<8xf32>
    %26 = vector.shape_cast %25 : vector<8xf32> to vector<8x1xf32>
    %c5 = arith.constant 5 : index
    %c0_9 = arith.constant 0 : index
    %27 = vector.load %arg2[%c5, %c0_9] : memref<136x128xf32, #tpu.memory_space<vmem>>, vector<1x1xf32>
    %28 = vector.broadcast %27 : vector<1x1xf32> to vector<8x1xf32>
    %29 = arith.addf %26, %28 : vector<8x1xf32>
    %c0_10 = arith.constant 0 : index
    %c0_11 = arith.constant 0 : index
    %30 = vector.load %arg3[%c0_10, %c0_11] : memref<8x1xf32, #tpu.memory_space<vmem>>, vector<8x1xf32>
    tpu.vector_store %arg3[%c0_10, %c0_11], %29 {strides = array<i32>} : memref<8x1xf32, #tpu.memory_space<vmem>>, vector<8x1xf32>,
    return
  }
  func.func @transform_0(%arg0: i32) -> (i32, i32) {
    %c0_i32 = arith.constant 0 : i32
    %c0_i32_0 = arith.constant 0 : i32
    return %arg0, %c0_i32 : i32, i32
  }
  func.func @transform_1(%arg0: i32) -> (i32, i32) {
    %c0_i32 = arith.constant 0 : i32
    %c0_i32_0 = arith.constant 0 : i32
    %c0_i32_1 = arith.constant 0 : i32
    return %c0_i32, %c0_i32_0 : i32, i32
  }
  func.func @transform_2(%arg0: i32) -> (i32, i32) {
    %c0_i32 = arith.constant 0 : i32
    %c0_i32_0 = arith.constant 0 : i32
    return %arg0, %c0_i32 : i32, i32
  }
}

</mosaic_0001>

<llo_original>
// kernel: tpu_custom_call.1
$region0: #{tpu_custom_call.1}
  #allocation0 [shape = 'u32[]', space=smem, size = 0x4, offset = 0x4, fixed_abs, tag = 'smem constant byte address 0x4 - core index']
  #allocation1 [shape = 'u32[144,128]{1,0:T(1,128)}', space=vmem, size = 0x12000, scoped, tag = 'internal scratch']
  %s0 = inlined_call_operand.vmem [shape: f32[8,2], index: 0, kind: input, shape index: {}]
  %s1 = inlined_call_operand.hbm [shape: f32[136,128], index: 1, kind: input, shape index: {}]
  %s2 = inlined_call_operand.vmem [shape: f32[8,1], index: 2, kind: output, shape index: {}]
  %s3 = sld [smem:[#allocation0]]
  $region22: #{tpu_custom_call.1} parent=0
    _
  %s5 = ssub.s32 1, %s3
  %s6 = scalar_select 0, %s5, %s3
  $region1: #{tpu_custom_call.1} parent=0
    #allocation2 [shape = 'u8[69632]{0}', space=vmem, size = 0x11000, scoped, tag = 'input window, operand 1, single buffered']
    #allocation3 [shape = 's32[1]{0}', space=sflag, size = 0x4, scoped, tag = 'scoped memory for tpu_custom_call.1']
    %7 = vsyncpa [#allocation3], 0
    // Predicated region
    $region2: #{tpu_custom_call.1} parent=1 // pred_check
      _
    $region3: #{tpu_custom_call.1} parent=1 // pred_check_branch
      %9 = sbr.rel (0) target = $region5
    $region4: #{tpu_custom_call.1} parent=1 // pred_region
      _
    $region5: #{tpu_custom_call.1} parent=1 // pred_fallthru
      _
    // Predicated region
    $region6: #{tpu_custom_call.1} parent=1 // pred_check
      _
    $region7: #{tpu_custom_call.1} parent=1 // pred_check_branch
      %11 = sbr.rel (0) target = $region9
    $region8: #{tpu_custom_call.1} parent=1 // pred_region
      %s13 = ssub.s32 2176, 2176
      %14 = vsyncadd [#allocation3], %s13
      %s15 = sshll.u32 [#allocation2], 4
      %s16 = int_to_ptr.vmem [resolvable:$true] %s15
      %21 = dma.hbm_to_vmem [thread:$0]  %s1, 2176, %s16, [#allocation3], 128, 128, 8
    $region9: #{tpu_custom_call.1} parent=1 // pred_fallthru
      _
    // Predicated region
    $region10: #{tpu_custom_call.1} parent=1 // pred_check
      _
    $region11: #{tpu_custom_call.1} parent=1 // pred_check_branch
      %23 = sbr.rel (0) target = $region13
    $region12: #{tpu_custom_call.1} parent=1 // pred_region
      %24 = dma.done [#allocation3], 2176
    $region13: #{tpu_custom_call.1} parent=1 // pred_fallthru
      _
    %v25 = vld [vmem:[%s0] sm:$0xff]
    %v26 = vld [vmem:[#allocation2] sm:$0x1]
    %28 = vset.pattern.permute.xlu0 0
    %29 = vperm.xlu0 %28, %v25
    %v30 = vpop.permute.xlu0 %29
    %v32 = vlaneseq
    %v33 = vshrl.u32 %v32, 7
    %v34 = vsub.s32 0, %v33
    %v35 = vrot.slane %v26, %v34
    %v36 = vmul.f32 %v30, %v35
    %v37 = vld [vmem:[#allocation2 + $0x1] sm:$0x1]
    %38 = vset.pattern.permute.xlu0 1
    %39 = vperm.xlu0 %38, %v25
    %v40 = vpop.permute.xlu0 %39
    %v42 = vlaneseq
    %v43 = vshrl.u32 %v42, 7
    %v44 = vsub.s32 0, %v43
    %v45 = vrot.slane %v37, %v44
    %v46 = vmul.f32 %v40, %v45
    %v47 = vadd.f32 %v36, %v46
    %v48 = vld [vmem:[#allocation2 + $0x2] sm:$0x1]
    %v49 = vlaneseq
    %v50 = vshrl.u32 %v49, 7
    %v51 = vsub.s32 0, %v50
    %v52 = vrot.slane %v48, %v51
    %v53 = vadd.f32 %v47, %v52
    %v54 = vtanh.pop %v53
    %v55 = vld [vmem:[#allocation2 + $0x8] sm:$0xff]
    %v56 = vld [vmem:[#allocation2 + $0x10] sm:$0xff]
    %v57 = vld [vmem:[#allocation2 + $0x18] sm:$0xff]
    %v58 = vld [vmem:[#allocation2 + $0x20] sm:$0xff]
    %v59 = vld [vmem:[#allocation2 + $0x28] sm:$0xff]
    %v60 = vld [vmem:[#allocation2 + $0x30] sm:$0xff]
    %v61 = vld [vmem:[#allocation2 + $0x38] sm:$0xff]
    %v62 = vld [vmem:[#allocation2 + $0x40] sm:$0xff]
    %v63 = vld [vmem:[#allocation2 + $0x48] sm:$0xff]
    %v64 = vld [vmem:[#allocation2 + $0x50] sm:$0xff]
    %v65 = vld [vmem:[#allocation2 + $0x58] sm:$0xff]
    %v66 = vld [vmem:[#allocation2 + $0x60] sm:$0xff]
    %v67 = vld [vmem:[#allocation2 + $0x68] sm:$0xff]
    %v68 = vld [vmem:[#allocation2 + $0x70] sm:$0xff]
    %v69 = vld [vmem:[#allocation2 + $0x78] sm:$0xff]
    %v70 = vld [vmem:[#allocation2 + $0x80] sm:$0xff]
    %v71 = vld [vmem:[#allocation2 + $0x3] sm:$0x1]
    %v72 = vlaneseq
    %v73 = vshrl.u32 %v72, 7
    %v74 = vsub.s32 0, %v73
    %v75 = vrot.slane %v71, %v74
    %76 = vmatprep.subr.mxu0 0.0
    %77 = vmatpush1.msra.mxu0 %v70
    %78 = vmatprep.subr.mxu0 0.0
    %79 = vmatpush1.msra.mxu0 %v69
    %80 = vmatprep.subr.mxu0 0.0
    %81 = vmatpush1.msra.mxu0 %v68
    %82 = vmatprep.subr.mxu0 0.0
    %83 = vmatpush1.msra.mxu0 %v67
    %84 = vmatprep.subr.mxu0 0.0
    %85 = vmatpush1.msra.mxu0 %v66
    %86 = vmatprep.subr.mxu0 0.0
    %87 = vmatpush1.msra.mxu0 %v65
    %88 = vmatprep.subr.mxu0 0.0
    %89 = vmatpush1.msra.mxu0 %v64
    %90 = vmatprep.subr.mxu0 0.0
    %91 = vmatpush1.msra.mxu0 %v63
    %92 = vmatprep.subr.mxu0 0.0
    %93 = vmatpush1.msra.mxu0 %v62
    %94 = vmatprep.subr.mxu0 0.0
    %95 = vmatpush1.msra.mxu0 %v61
    %96 = vmatprep.subr.mxu0 0.0
    %97 = vmatpush1.msra.mxu0 %v60
    %98 = vmatprep.subr.mxu0 0.0
    %99 = vmatpush1.msra.mxu0 %v59
    %100 = vmatprep.subr.mxu0 0.0
    %101 = vmatpush1.msra.mxu0 %v58
    %102 = vmatprep.subr.mxu0 0.0
    %103 = vmatpush1.msra.mxu0 %v57
    %104 = vmatprep.subr.mxu0 0.0
    %105 = vmatpush1.msra.mxu0 %v56
    %106 = vmatprep.subr.mxu0 0.0
    %107 = vmatpush1.msra.mxu0 %v55
    %108 = vmatprep.subr.mxu0 0.0
    %109 = vmatpush2.msra.mxu0 0.0
    %110 = vmatprep.subr.mxu0 0.0
    %111 = vmatpush2.msra.mxu0 0.0
    %112 = vmatprep.subr.mxu0 0.0
    %113 = vmatpush2.msra.mxu0 0.0
    %114 = vmatprep.subr.mxu0 0.0
    %115 = vmatpush2.msra.mxu0 0.0
    %116 = vmatprep.subr.mxu0 0.0
    %117 = vmatpush2.msra.mxu0 0.0
    %118 = vmatprep.subr.mxu0 0.0
    %119 = vmatpush2.msra.mxu0 0.0
    %120 = vmatprep.subr.mxu0 0.0
    %121 = vmatpush2.msra.mxu0 0.0
    %122 = vmatprep.subr.mxu0 0.0
    %123 = vmatpush2.msra.mxu0 0.0
    %124 = vmatprep.subr.mxu0 0.0
    %125 = vmatpush2.msra.mxu0 0.0
    %126 = vmatprep.subr.mxu0 0.0
    %127 = vmatpush2.msra.mxu0 0.0
    %128 = vmatprep.subr.mxu0 0.0
    %129 = vmatpush2.msra.mxu0 0.0
    %130 = vmatprep.subr.mxu0 0.0
    %131 = vmatpush2.msra.mxu0 0.0
    %132 = vmatprep.subr.mxu0 0.0
    %133 = vmatpush2.msra.mxu0 0.0
    %134 = vmatprep.subr.mxu0 0.0
    %135 = vmatpush2.msra.mxu0 0.0
    %136 = vmatprep.subr.mxu0 0.0
    %137 = vmatpush2.msra.mxu0 0.0
    %138 = vmatprep.subr.mxu0 0.0
    %139 = vmatpush2.msra.mxu0 0.0
    %140 = vmatprep.mubr.f32.mxu0 0.0
    %141 = vmatmul.mubr.f32.gmra.mxu0 %v54
    %v142 = vpop.f32.mrf.mxu0
    %v143 = vadd.f32 %v75, %v142
    %v144 = vpop.f32.mrf.mxu0
    %145 = vdwg.mxu0
    %v146 = vtanh.pop %v143
    %v147 = vld [vmem:[#allocation2 + $0x4] sm:$0x1]
    %v148 = vlaneseq
    %v149 = vshrl.u32 %v148, 7
    %v150 = vsub.s32 0, %v149
    %v151 = vrot.slane %v147, %v150
    %v152 = vmul.f32 %v146, %v151
    %153 = vadd.xlane.f32.xlu0 %v152
    %v154 = vpop.xlane.xlu0 %153
    %v155 = vld [vmem:[#allocation2 + $0x5] sm:$0x1]
    %v156 = vlaneseq
    %v157 = vshrl.u32 %v156, 7
    %v158 = vsub.s32 0, %v157
    %v159 = vrot.slane %v155, %v158
    %v160 = vadd.f32 %v154, %v159
    %vm161 = vcmask 7168
    %162 = vst.msk [vmem:[%s2] sm:$0xff] %vm161, %v160
    // Predicated region
    $region14: #{tpu_custom_call.1} parent=1 // pred_check
      _
    $region15: #{tpu_custom_call.1} parent=1 // pred_check_branch
      %164 = sbr.rel (0) target = $region17
    $region16: #{tpu_custom_call.1} parent=1 // pred_region
      _
    $region17: #{tpu_custom_call.1} parent=1 // pred_fallthru
      _
    // Predicated region
    $region18: #{tpu_custom_call.1} parent=1 // pred_check
      _
    $region19: #{tpu_custom_call.1} parent=1 // pred_check_branch
      %166 = sbr.rel (0) target = $region21
    $region20: #{tpu_custom_call.1} parent=1 // pred_region
      _
    $region21: #{tpu_custom_call.1} parent=1 // pred_fallthru
      _
    %167 = vsyncpa [#allocation3], 1

</llo_original>
